<compile_context>
chip_gen: v6e
topology: v6e:2x2x1
jax: 0.10.0
libtpu: 0.0.40
codegen_flags: <defaults>
</compile_context>

<pallas_src>
import functools

import jax
import jax.numpy as jnp
from jax.experimental import pallas as pl
from jax.experimental.pallas import tpu as pltpu

_LANES = 128


def _sublane_multiple(dtype) -> int:
    # Sub-32-bit dtypes pack along sublanes: f32 -> 8, bf16 -> 16, int8/fp8 -> 32.
    itemsize = jnp.dtype(dtype).itemsize
    return 8 * max(1, 4 // max(1, itemsize))


def _tpu_generation():
    """Best-effort (vmem_capacity_bytes, is_v7x) probe; never raises."""
    cap = 128 << 20
    is_v7x = False
    try:
        cap = int(pltpu.get_tpu_info().vmem_capacity_bytes)
    except Exception:
        pass
    try:
        kind = jax.devices()[0].device_kind.lower()
        is_v7x = any(tag in kind for tag in ("v7", "7x", "tpu7"))
    except Exception:
        # Fall back to the VMEM heuristic (v7x is the 64 MiB/TC generation).
        is_v7x = cap <= (64 << 20)
    return cap, is_v7x


def _vmem_plan(cap, is_v7x):
    """Generation-aware (vmem_limit_bytes, per-block byte budget)."""
    if is_v7x or cap <= (64 << 20):
        # v7x: 64 MiB physical VMEM per TensorCore.  Keep the 4 live blocks
        # (double-buffered input + output) well inside a ~48 MiB scoped limit.
        vmem_limit = min((cap * 3) // 4, 48 << 20)
        per_block = vmem_limit // 5            # ~9.6 MiB -> 4 live ~= 38 MiB
    else:
        # v5e/v6e: 128 MiB physical.  ~16 MiB blocks halve grid-step count.
        vmem_limit = min((cap * 3) // 4, 96 << 20)
        per_block = vmem_limit // 6            # ~16 MiB -> 4 live ~= 64 MiB
    return int(vmem_limit), int(per_block)


def _relux_kernel(x_ref, o_ref, *, thre):
    x = x_ref[...]
    lo = jnp.zeros((), dtype=x.dtype)
    hi = jnp.full((), thre, dtype=x.dtype)
    o_ref[...] = jnp.minimum(jnp.maximum(x, lo), hi)


def _relux_slab(x2d, thre, donate):
    """Pallas clamp over a lane-dense (rows, 128) slab."""
    rows, lanes = x2d.shape
    dtype = x2d.dtype
    itemsize = jnp.dtype(dtype).itemsize
    sub = _sublane_multiple(dtype)

    cap, is_v7x = _tpu_generation()
    vmem_limit, block_budget = _vmem_plan(cap, is_v7x)

    # Largest sublane-aligned row tile under the per-block byte budget.
    tm_target = max(sub, (block_budget // (lanes * itemsize)) // sub * sub)
    nbytes = rows * lanes * itemsize
    if rows <= tm_target:
        if nbytes >= (2 << 20) and rows >= 2 * sub:
            # Keep >= 2 grid steps so read / clamp / write stay pipelined.
            tm = max(sub, pl.cdiv(pl.cdiv(rows, 2), sub) * sub)
        else:
            tm = rows  # single full-extent block (small slab)
    else:
        tm = tm_target
    grid = (pl.cdiv(rows, tm),)

    if is_v7x and hasattr(pltpu, "CORE_PARALLEL"):
        # v7x has 2 TensorCores/chip: let both stream disjoint halves.
        dim_sem = (pltpu.CORE_PARALLEL,)
    else:
        dim_sem = ("parallel",)

    kernel = functools.partial(_relux_kernel, thre=thre)

    return pl.pallas_call(
        kernel,
        out_shape=jax.ShapeDtypeStruct((rows, lanes), dtype),
        grid=grid,
        in_specs=[pl.BlockSpec((tm, lanes), lambda i: (i, 0))],
        out_specs=pl.BlockSpec((tm, lanes), lambda i: (i, 0)),
        compiler_params=pltpu.CompilerParams(
            dimension_semantics=dim_sem,
            vmem_limit_bytes=vmem_limit,
        ),
        cost_estimate=pl.CostEstimate(
            flops=2 * rows * lanes,
            transcendentals=0,
            bytes_accessed=2 * rows * lanes * itemsize,
        ),
        input_output_aliases=({0: 0} if donate else {}),
    )(x2d)


def relux(x, thre=4.0, *, min_pallas_bytes: int = 1 << 20, donate: bool = False):
    """Elementwise clamp(x, 0, thre) — PyTorch ReLUX.forward."""
    x = jnp.asarray(x)
    dtype = x.dtype
    n = x.size
    itemsize = jnp.dtype(dtype).itemsize
    nbytes = n * itemsize

    # Pallas path needs a compile-time Python-number threshold.
    # TODO(synk): pass thre as a (1,1) SMEM scalar if it must vary at runtime.
    static_thre = isinstance(thre, (int, float)) and not isinstance(thre, bool)

    # Fallbacks that already sit at (or above) the custom-call roofline:
    #  * tiny inputs: launch overhead + blocked XLA fusion dominate;
    #  * numel not a multiple of 128: pad/slice around a custom call would add
    #    whole extra HBM passes, while XLA's fused clamp is exactly 2n bytes.
    if (n == 0 or nbytes < min_pallas_bytes or n % _LANES != 0
            or not static_thre):
        lo = jnp.zeros((), dtype)
        hi = jnp.asarray(thre).astype(dtype)
        return jnp.clip(x, lo, hi)

    rows = n // _LANES
    x2d = x.reshape(rows, _LANES)  # contiguous reshape: free, no HBM pass
    out2d = _relux_slab(x2d, thre, donate)
    return out2d.reshape(x.shape)


if __name__ == "__main__":
    key = jax.random.PRNGKey(0)
    # NCHW input, small shape: batch=2, channels=4, spatial=16x16.
    x = jax.random.normal(key, (2, 4, 16, 16), dtype=jnp.float32) * 5.0
    y_ref = jnp.clip(x, 0.0, 4.0)  # torch.clamp(x, 0, 4) reference

    # 1) Force the Pallas slab path on the small demo tensor (numel = 2048,
    #    a multiple of 128) to verify the kernel compiles and runs on TPU.
    y_pallas = relux(x, thre=4.0, min_pallas_bytes=0)
    jax.block_until_ready(y_pallas)
    assert y_pallas.shape == x.shape and y_pallas.dtype == x.dtype
    assert jnp.allclose(y_pallas, y_ref), "Pallas path mismatch vs reference clamp"

    # 2) Default dispatch: an 8 KiB input takes the fused small-input fallback.
    y = relux(x, thre=4.0)
    jax.block_until_ready(y)
    assert jnp.allclose(y, y_ref), "fallback path mismatch vs reference clamp"

    print("KERNEL_OK")
</pallas_src>

<mosaic_0001>
module attributes {stable_mosaic.version = 11 : i64} {
  func.func @_relux_kernel(%arg0: i32, %arg1: memref<16x128xf32, #tpu.memory_space<vmem>>, %arg2: memref<16x128xf32, #tpu.memory_space<vmem>>) attributes {dimension_semantics = [#tpu.dimension_semantics<parallel>], iteration_bounds = array<i64: 1>, scalar_prefetch = 0 : i64, scratch_operands = 0 : i64, tpu.core_type = #tpu.core_type<tc>, window_params = [{transform_indices = @transform_0, window_bounds = array<i64: 16, 128>}, {transform_indices = @transform_1, window_bounds = array<i64: 16, 128>}]} {
    %c0 = arith.constant 0 : index
    %c0_0 = arith.constant 0 : index
    %0 = vector.load %arg1[%c0, %c0_0] : memref<16x128xf32, #tpu.memory_space<vmem>>, vector<16x128xf32>
    %cst = arith.constant 0.000000e+00 : f32
    %1 = vector.broadcast %cst : f32 to vector<16x128xf32>
    %2 = arith.maximumf %0, %1 : vector<16x128xf32>
    %cst_1 = arith.constant 4.000000e+00 : f32
    %3 = vector.broadcast %cst_1 : f32 to vector<16x128xf32>
    %4 = arith.minimumf %2, %3 : vector<16x128xf32>
    %c0_2 = arith.constant 0 : index
    %c0_3 = arith.constant 0 : index
    %5 = vector.load %arg2[%c0_2, %c0_3] : memref<16x128xf32, #tpu.memory_space<vmem>>, vector<16x128xf32>
    tpu.vector_store %arg2[%c0_2, %c0_3], %4 {strides = array<i32>} : memref<16x128xf32, #tpu.memory_space<vmem>>, vector<16x128xf32>,
    return
  }
  func.func @transform_0(%arg0: i32) -> (i32, i32) {
    %c0_i32 = arith.constant 0 : i32
    %c0_i32_0 = arith.constant 0 : i32
    return %arg0, %c0_i32 : i32, i32
  }
  func.func @transform_1(%arg0: i32) -> (i32, i32) {
    %c0_i32 = arith.constant 0 : i32
    %c0_i32_0 = arith.constant 0 : i32
    return %arg0, %c0_i32 : i32, i32
  }
}

</mosaic_0001>

<llo_original>
// kernel: tpu_custom_call.1
$region0: #{tpu_custom_call.1}
  #allocation0 [shape = 'u32[]', space=smem, size = 0x4, offset = 0x4, fixed_abs, tag = 'smem constant byte address 0x4 - core index']
  #allocation1 [shape = 'u32[144,128]{1,0:T(1,128)}', space=vmem, size = 0x12000, scoped, tag = 'internal scratch']
  %s0 = inlined_call_operand.hbm [shape: f32[16,128], index: 0, kind: input, shape index: {}]
  %s1 = inlined_call_operand.hbm [shape: f32[16,128], index: 1, kind: output, shape index: {}]
  %s2 = sld [smem:[#allocation0]]
  $region18: #{tpu_custom_call.1} parent=0
    _
  %s4 = ssub.s32 1, %s2
  %s5 = scalar_select 0, %s4, %s2
  $region1: #{tpu_custom_call.1} parent=0
    #allocation2 [shape = 'u8[8192]{0}', space=vmem, size = 0x2000, scoped, tag = 'input window, operand 0, single buffered']
    #allocation3 [shape = 's32[1]{0}', space=sflag, size = 0x4, scoped, tag = 'scoped memory for tpu_custom_call.1']
    #allocation4 [shape = 's32[1]{0}', space=sflag, size = 0x4, scoped, tag = 'scoped memory for tpu_custom_call.1']
    #allocation5 [shape = 'u8[8192]{0}', space=vmem, size = 0x2000, scoped, tag = 'output window, operand 0, single buffered']
    %6 = vsyncpa [#allocation3], 0
    %7 = vsyncpa [#allocation4], 0
    // Predicated region
    $region2: #{tpu_custom_call.1} parent=1 // pred_check
      _
    $region3: #{tpu_custom_call.1} parent=1 // pred_check_branch
      %9 = sbr.rel (0) target = $region5
    $region4: #{tpu_custom_call.1} parent=1 // pred_region
      %s11 = ssub.s32 256, 256
      %12 = vsyncadd [#allocation3], %s11
      %s13 = sshll.u32 [#allocation2], 4
      %s14 = int_to_ptr.vmem [resolvable:$true] %s13
      %19 = dma.hbm_to_vmem [thread:$0]  %s0, 256, %s14, [#allocation3], 128, 128, 8
    $region5: #{tpu_custom_call.1} parent=1 // pred_fallthru
      _
    // Predicated region
    $region6: #{tpu_custom_call.1} parent=1 // pred_check
      _
    $region7: #{tpu_custom_call.1} parent=1 // pred_check_branch
      %21 = sbr.rel (0) target = $region9
    $region8: #{tpu_custom_call.1} parent=1 // pred_region
      %22 = dma.done [#allocation3], 256
    $region9: #{tpu_custom_call.1} parent=1 // pred_fallthru
      _
    %v23 = vld [vmem:[#allocation2] sm:$0xff]
    %v24 = vld [vmem:[#allocation2 + $0x8] sm:$0xff]
    %v25 = vmax.f32 %v23, 0.0
    %v26 = vmax.f32 %v24, 0.0
    %v27 = vmin.f32 %v25, 4.0
    %v28 = vmin.f32 %v26, 4.0
    %29 = vst [vmem:[#allocation5] sm:$0xff] %v27
    %30 = vst [vmem:[#allocation5 + $0x8] sm:$0xff] %v28
    // Predicated region
    $region10: #{tpu_custom_call.1} parent=1 // pred_check
      _
    $region11: #{tpu_custom_call.1} parent=1 // pred_check_branch
      %32 = sbr.rel (0) target = $region13
    $region12: #{tpu_custom_call.1} parent=1 // pred_region
      %s34 = ssub.s32 256, 256
      %35 = vsyncadd [#allocation4], %s34
      %s36 = sshll.u32 [#allocation5], 4
      %s37 = int_to_ptr.vmem [resolvable:$true] %s36
      %42 = dma.vmem_to_hbm [thread:$0]  %s37, 256, %s1, [#allocation4], 128, 128, 8
    $region13: #{tpu_custom_call.1} parent=1 // pred_fallthru
      _
    // Predicated region
    $region14: #{tpu_custom_call.1} parent=1 // pred_check
      _
    $region15: #{tpu_custom_call.1} parent=1 // pred_check_branch
      %44 = sbr.rel (0) target = $region17
    $region16: #{tpu_custom_call.1} parent=1 // pred_region
      %45 = dma.done [#allocation4], 256
    $region17: #{tpu_custom_call.1} parent=1 // pred_fallthru
      _
    %46 = vsyncpa [#allocation3], 1
    %47 = vsyncpa [#allocation4], 1

</llo_original>
